<compile_context>
chip_gen: v6e
topology: v6e:2x2x1
jax: 0.10.0
libtpu: 0.0.40
codegen_flags: <defaults>
</compile_context>

<pallas_src>
import jax
import jax.numpy as jnp
from jax.experimental import pallas as pl
from jax.experimental.pallas import tpu as pltpu


def _silu(z):
    # Exact sigmoid (VALU divide).  pl.reciprocal(..., approx=True) would push
    # the divide onto the EUP slot (thin compute margin on v7x), but its approx
    # error risks the 1e-4 parity tolerance; the MLP is a handful of sublanes
    # and hides entirely under the DMA anyway.
    return z * (1.0 / (1.0 + jnp.exp(-z)))


def _dense_vpu(w_ref, b_ref, h):
    """(Cout, Cin) @ (Cin, TN) + b as unrolled VPU broadcast-FMAs.

    Cin <= 8 here, so the 128x128 / 256x256 systolic array would be >97%
    padding and add XLU shuffles; a handful of VALU FMAs hides under the DMA of
    this bandwidth-bound kernel.  Kept on the VPU on purpose — do NOT move to
    the MXU.
    """
    w = w_ref[...]
    cin = w.shape[1]
    acc = b_ref[...] + w[:, 0:1] * h[0:1, :]
    for k in range(1, cin):
        acc = acc + w[:, k:k + 1] * h[k:k + 1, :]
    return acc


def _freqconv_kernel(mask_ref,
                     w1_ref, b1_ref,
                     w2r_ref, b2r_ref, w3r_ref, b3r_ref,
                     w2i_ref, b2i_ref, w3i_ref, b3i_ref,
                     xr_ref, xi_ref,
                     outr_ref, outi_ref):
    # TODO(synk): the coordinate mask could be generated in-kernel from a
    # broadcasted_iota + program_id offset (drops one tiny HBM stream), but that
    # needs vector integer div/mod; streaming the (2, TN) mask is negligible.
    mask = mask_ref[...]                                    # (2, TN)

    # Fused layer 1: real & imag branches share the mask pass and one SiLU.
    h1 = _silu(_dense_vpu(w1_ref, b1_ref, mask))            # (16, TN)
    h1r, h1i = h1[0:8, :], h1[8:16, :]                      # 8-sublane aligned split

    h2r = _silu(_dense_vpu(w2r_ref, b2r_ref, h1r))          # (4, TN)
    h2i = _silu(_dense_vpu(w2i_ref, b2i_ref, h1i))          # (4, TN)

    # Layer-3 weights arrive pre-tiled across the batch copies of the row block
    # ((RB, 4) / (RB, 1), RB = reps*planes), so this directly yields per-row
    # multiplication weights for the whole flattened (B*planes) row block.
    wr = _dense_vpu(w3r_ref, b3r_ref, h2r)                  # (RB, TN)
    wi = _dense_vpu(w3i_ref, b3i_ref, h2i)                  # (RB, TN)

    xr = xr_ref[...]                                        # (RB, TN)
    xi = xi_ref[...]
    # Complex multiply (wr + i*wi) * (xr + i*xi); lane-dense, unmasked stores.
    outr_ref[...] = wr * xr - wi * xi
    outi_ref[...] = wr * xi + wi * xr


def _build_mask(H, W):
    # Exactly mirrors the torch mask construction: shape (2, W, H).
    row = jnp.arange(-(H / 2), H / 2, dtype=jnp.float32)            # (H,)
    m0 = jnp.tile(row[None, :], (W, 1))                             # (W, H)
    col = jnp.arange(-(W / 2), W / 2, dtype=jnp.float32)            # (W,)
    m1 = jnp.tile(col[:, None], (1, H))                             # (W, H)
    return jnp.stack([m0, m1], axis=0)                              # (2, W, H)


def _vmem_budget():
    """Generation-aware (tiling_budget_bytes, vmem_limit_bytes)."""
    cap = None
    try:
        cap = getattr(pltpu.get_tpu_info(), "vmem_capacity_bytes", None)
    except Exception:
        cap = None
    if cap is not None and cap >= 100 * 1024 * 1024:
        # v5e / v6e: 128 MiB physical VMEM -> big double-buffered tiles.
        return 80 * 1024 * 1024, 100 * 1024 * 1024
    # v7x has only 64 MiB per TensorCore (scoped default 32 MiB); unknown -> safe.
    return 40 * 1024 * 1024, 48 * 1024 * 1024


def _pick_tiling(R, P, N_pad, budget):
    """Choose (row_block, lane_tile) for the flattened (R, N_pad) streams.

    VMEM model: 4 streamed f32 (rows, tn) slabs (xr, xi, outr, outi) plus the
    (2 -> 8 sublane-padded, tn) mask, each double-buffered, with rows padded to
    a multiple of 8 (sublane tile).  Weight blocks are KB-scale and live in the
    budget->limit headroom.
    """
    def max_tn_for(rows):
        rows_pad = -(-rows // 8) * 8
        per_lane = (4 * rows_pad + 8) * 4 * 2
        return (budget // per_lane) // 128 * 128

    rb = R
    if max_tn_for(R) < 512 and R > P:
        # Split the flattened row axis instead of shrinking below 512-lane
        # tiles (mem-bound: 512+ lanes ~ HBM roofline, 128 lanes ~ 3x slower).
        # Row blocks must be multiples of planes (weight alignment) and of 8
        # (legal, unpadded sublane blocks) and divide R.
        cands = sorted((d for d in range(P, R, P) if R % d == 0 and d % 8 == 0),
                       reverse=True)
        for d in cands:
            if max_tn_for(d) >= 512:
                rb = d
                break
        else:
            if cands:
                rb = cands[-1]

    tn = min(N_pad, max(128, max_tn_for(rb)))
    if tn >= N_pad and N_pad >= 256:
        # Keep >=2 lane tiles so the "parallel" grid can shard across both
        # TensorCores on v7x (and the DMA pipeline has something to overlap).
        tn = N_pad // 2
    tn = max(128, (tn // 128) * 128)
    while N_pad % tn:
        tn -= 128
    return rb, tn


def _kernel_multiply(mask_flat, params_r, params_i, xr_f, xi_f, planes):
    """(w_real + i*w_imag) * (xr + i*xi) on the flattened (B*planes, N) layout."""
    R, N = xr_f.shape
    P = planes
    w1r, b1r, w2r, b2r, w3r, b3r = params_r
    w1i, b1i, w2i, b2i, w3i, b3i = params_i
    # Fuse the real/imag first layers into a single (16, 2) weight / (16, 1) bias.
    w1 = jnp.concatenate([w1r, w1i], axis=0)
    b1 = jnp.concatenate([b1r, b1i], axis=0)

    # Pad the lane axis up to a multiple of 128: regular lane-dense tiling and
    # unmasked stores on every generation (padded columns sliced off below).
    N_pad = -(-N // 128) * 128
    if N_pad != N:
        pad = ((0, 0), (0, N_pad - N))
        xr_f = jnp.pad(xr_f, pad)
        xi_f = jnp.pad(xi_f, pad)
        mask_flat = jnp.pad(mask_flat, pad)

    budget, vmem_limit = _vmem_budget()
    rb, tn = _pick_tiling(R, P, N_pad, budget)
    reps = rb // P
    # Bake the batch replication of the per-plane layer-3 weights into the tiny
    # (planes, 4) / (planes, 1) tensors, so the kernel emits (rb, TN) weights
    # directly (no in-kernel tile/concat of the MLP output across sublanes).
    w3r_t, b3r_t = jnp.tile(w3r, (reps, 1)), jnp.tile(b3r, (reps, 1))
    w3i_t, b3i_t = jnp.tile(w3i, (reps, 1)), jnp.tile(b3i, (reps, 1))

    grid = (R // rb, N_pad // tn)

    def const_spec(arr):
        # Full-array block, constant index map: fetched once, reused every step.
        return pl.BlockSpec(arr.shape, lambda m, n: (0, 0))

    x_spec = pl.BlockSpec((rb, tn), lambda m, n: (m, n))
    in_specs = [
        pl.BlockSpec((2, tn), lambda m, n: (0, n)),      # coordinate mask
        const_spec(w1), const_spec(b1),
        const_spec(w2r), const_spec(b2r), const_spec(w3r_t), const_spec(b3r_t),
        const_spec(w2i), const_spec(b2i), const_spec(w3i_t), const_spec(b3i_t),
        x_spec, x_spec,
    ]

    out_r, out_i = pl.pallas_call(
        _freqconv_kernel,
        grid=grid,
        out_shape=(jax.ShapeDtypeStruct((R, N_pad), jnp.float32),
                   jax.ShapeDtypeStruct((R, N_pad), jnp.float32)),
        in_specs=in_specs,
        out_specs=(x_spec, x_spec),
        compiler_params=pltpu.CompilerParams(
            dimension_semantics=("parallel", "parallel"),   # shard across TCs
            vmem_limit_bytes=vmem_limit),
    )(mask_flat, w1, b1, w2r, b2r, w3r_t, b3r_t, w2i, b2i, w3i_t, b3i_t,
      xr_f, xi_f)

    if N_pad != N:
        out_r = out_r[:, :N]
        out_i = out_i[:, :N]
    return out_r, out_i


def freq_conv_dw_ifft(xr, xi, params_r, params_i):
    """xr, xi: (B, planes, H, W) float32 (real/imag of the complex input)."""
    B, P, H, W = xr.shape
    assert H == W, "module's weights*x broadcast assumes square feature maps"
    N = H * W
    mask_flat = _build_mask(H, W).reshape(2, N)
    out_r, out_i = _kernel_multiply(mask_flat, params_r, params_i,
                                    xr.reshape(B * P, N), xi.reshape(B * P, N), P)
    y = jax.lax.complex(out_r, out_i).reshape(B, P, H, W)
    # TODO(synk): the spatial part of ifftshift could be folded into the output
    # index_map + pltpu.roll to save an HBM pass, but the torch reference shifts
    # ALL dims (incl. batch & channel), so it stays in XLA for exact parity;
    # ifft2 has no Pallas primitive.
    return jnp.fft.ifft2(jnp.fft.ifftshift(y)).real


def _conv1x1_params(key, cin, cout):
    k1, k2 = jax.random.split(key)
    bound = 1.0 / (cin ** 0.5)
    w = jax.random.uniform(k1, (cout, cin), jnp.float32, -bound, bound)
    b = jax.random.uniform(k2, (cout, 1), jnp.float32, -bound, bound)
    return w, b


def _mlp_small_params(key, planes):
    k1, k2, k3 = jax.random.split(key, 3)
    w1, b1 = _conv1x1_params(k1, 2, 8)
    w2, b2 = _conv1x1_params(k2, 8, 4)
    w3, b3 = _conv1x1_params(k3, 4, planes)
    return (w1, b1, w2, b2, w3, b3)


def _ref_weights(mask_flat, params):
    w1, b1, w2, b2, w3, b3 = params
    hp = jax.lax.Precision.HIGHEST
    h = _silu(jnp.einsum('oi,in->on', w1, mask_flat, precision=hp) + b1)
    h = _silu(jnp.einsum('oi,in->on', w2, h, precision=hp) + b2)
    return jnp.einsum('oi,in->on', w3, h, precision=hp) + b3


if __name__ == "__main__":
    B, planes, H, W = 2, 4, 16, 16
    N = H * W

    key = jax.random.PRNGKey(0)
    kxr, kxi, kpr, kpi = jax.random.split(key, 4)
    xr = jax.random.normal(kxr, (B, planes, H, W), jnp.float32)
    xi = jax.random.normal(kxi, (B, planes, H, W), jnp.float32)

    params_r = _mlp_small_params(kpr, planes)   # mlp_real
    params_i = _mlp_small_params(kpi, planes)   # mlp_imag

    # Full forward (Pallas kernel + fft glue).
    out = freq_conv_dw_ifft(xr, xi, params_r, params_i)
    out = jax.block_until_ready(out)
    assert out.shape == (B, planes, H, W)
    assert out.dtype == jnp.float32

    # Cross-check the kernel portion (weights * x) against a pure-JAX reference.
    mask_flat = _build_mask(H, W).reshape(2, N)
    kr, ki = _kernel_multiply(mask_flat, params_r, params_i,
                              xr.reshape(B * planes, N),
                              xi.reshape(B * planes, N), planes)
    kr, ki = jax.block_until_ready((kr, ki))
    wr = _ref_weights(mask_flat, params_r)
    wi = _ref_weights(mask_flat, params_i)
    xr_f = xr.reshape(B, planes, N)
    xi_f = xi.reshape(B, planes, N)
    ref_r = wr[None] * xr_f - wi[None] * xi_f
    ref_i = wr[None] * xi_f + wi[None] * xr_f
    assert jnp.allclose(kr.reshape(B, planes, N), ref_r, atol=1e-4, rtol=1e-4)
    assert jnp.allclose(ki.reshape(B, planes, N), ref_i, atol=1e-4, rtol=1e-4)

    # End-to-end parity of the full forward pass against pure JAX.
    y_ref = jnp.fft.ifft2(jnp.fft.ifftshift(
        jax.lax.complex(ref_r, ref_i).reshape(B, planes, H, W))).real
    assert jnp.allclose(out, y_ref, atol=1e-4, rtol=1e-4)

    print("KERNEL_OK")
</pallas_src>

<mosaic_0001>
module attributes {stable_mosaic.version = 11 : i64} {
  func.func @_freqconv_kernel(%arg0: i32, %arg1: i32, %arg2: memref<2x128xf32, #tpu.memory_space<vmem>>, %arg3: memref<16x2xf32, #tpu.memory_space<vmem>>, %arg4: memref<16x1xf32, #tpu.memory_space<vmem>>, %arg5: memref<4x8xf32, #tpu.memory_space<vmem>>, %arg6: memref<4x1xf32, #tpu.memory_space<vmem>>, %arg7: memref<8x4xf32, #tpu.memory_space<vmem>>, %arg8: memref<8x1xf32, #tpu.memory_space<vmem>>, %arg9: memref<4x8xf32, #tpu.memory_space<vmem>>, %arg10: memref<4x1xf32, #tpu.memory_space<vmem>>, %arg11: memref<8x4xf32, #tpu.memory_space<vmem>>, %arg12: memref<8x1xf32, #tpu.memory_space<vmem>>, %arg13: memref<8x128xf32, #tpu.memory_space<vmem>>, %arg14: memref<8x128xf32, #tpu.memory_space<vmem>>, %arg15: memref<8x128xf32, #tpu.memory_space<vmem>>, %arg16: memref<8x128xf32, #tpu.memory_space<vmem>>) attributes {dimension_semantics = [#tpu.dimension_semantics<parallel>, #tpu.dimension_semantics<parallel>], iteration_bounds = array<i64: 1, 2>, scalar_prefetch = 0 : i64, scratch_operands = 0 : i64, tpu.core_type = #tpu.core_type<tc>, window_params = [{transform_indices = @transform_0, window_bounds = array<i64: 2, 128>}, {pipeline_mode = #tpu.pipeline_mode<synchronous>, transform_indices = @transform_1, window_bounds = array<i64: 16, 2>}, {pipeline_mode = #tpu.pipeline_mode<synchronous>, transform_indices = @transform_2, window_bounds = array<i64: 16, 1>}, {pipeline_mode = #tpu.pipeline_mode<synchronous>, transform_indices = @transform_3, window_bounds = array<i64: 4, 8>}, {pipeline_mode = #tpu.pipeline_mode<synchronous>, transform_indices = @transform_4, window_bounds = array<i64: 4, 1>}, {pipeline_mode = #tpu.pipeline_mode<synchronous>, transform_indices = @transform_5, window_bounds = array<i64: 8, 4>}, {pipeline_mode = #tpu.pipeline_mode<synchronous>, transform_indices = @transform_6, window_bounds = array<i64: 8, 1>}, {pipeline_mode = #tpu.pipeline_mode<synchronous>, transform_indices = @transform_7, window_bounds = array<i64: 4, 8>}, {pipeline_mode = #tpu.pipeline_mode<synchronous>, transform_indices = @transform_8, window_bounds = array<i64: 4, 1>}, {pipeline_mode = #tpu.pipeline_mode<synchronous>, transform_indices = @transform_9, window_bounds = array<i64: 8, 4>}, {pipeline_mode = #tpu.pipeline_mode<synchronous>, transform_indices = @transform_10, window_bounds = array<i64: 8, 1>}, {transform_indices = @transform_11, window_bounds = array<i64: 8, 128>}, {transform_indices = @transform_12, window_bounds = array<i64: 8, 128>}, {transform_indices = @transform_13, window_bounds = array<i64: 8, 128>}, {transform_indices = @transform_14, window_bounds = array<i64: 8, 128>}]} {
    %c0 = arith.constant 0 : index
    %c0_0 = arith.constant 0 : index
    %0 = vector.load %arg2[%c0, %c0_0] : memref<2x128xf32, #tpu.memory_space<vmem>>, vector<2x128xf32>
    %c0_1 = arith.constant 0 : index
    %c0_2 = arith.constant 0 : index
    %1 = vector.load %arg3[%c0_1, %c0_2] : memref<16x2xf32, #tpu.memory_space<vmem>>, vector<16x2xf32>
    %c0_3 = arith.constant 0 : index
    %c0_4 = arith.constant 0 : index
    %2 = vector.load %arg4[%c0_3, %c0_4] : memref<16x1xf32, #tpu.memory_space<vmem>>, vector<16x1xf32>
    %3 = vector.extract_strided_slice %1 {offsets = [0, 0], sizes = [16, 1], strides = [1, 1]} : vector<16x2xf32> to vector<16x1xf32>
    %4 = vector.extract_strided_slice %0 {offsets = [0, 0], sizes = [1, 128], strides = [1, 1]} : vector<2x128xf32> to vector<1x128xf32>
    %5 = vector.broadcast %3 : vector<16x1xf32> to vector<16x128xf32>
    %6 = vector.broadcast %4 : vector<1x128xf32> to vector<16x128xf32>
    %7 = arith.mulf %5, %6 : vector<16x128xf32>
    %8 = vector.broadcast %2 : vector<16x1xf32> to vector<16x128xf32>
    %9 = arith.addf %8, %7 : vector<16x128xf32>
    %10 = vector.extract_strided_slice %1 {offsets = [0, 1], sizes = [16, 1], strides = [1, 1]} : vector<16x2xf32> to vector<16x1xf32>
    %11 = vector.extract_strided_slice %0 {offsets = [1, 0], sizes = [1, 128], strides = [1, 1]} : vector<2x128xf32> to vector<1x128xf32>
    %12 = vector.broadcast %10 : vector<16x1xf32> to vector<16x128xf32>
    %13 = vector.broadcast %11 : vector<1x128xf32> to vector<16x128xf32>
    %14 = arith.mulf %12, %13 : vector<16x128xf32>
    %15 = arith.addf %9, %14 : vector<16x128xf32>
    %cst = arith.constant 0.000000e+00 : f32
    %16 = vector.broadcast %cst : f32 to vector<16x128xf32>
    %17 = arith.subf %16, %15 : vector<16x128xf32>
    %18 = math.exp %17 : vector<16x128xf32>
    %cst_5 = arith.constant 1.000000e+00 : f32
    %19 = vector.broadcast %cst_5 : f32 to vector<16x128xf32>
    %20 = arith.addf %19, %18 : vector<16x128xf32>
    %cst_6 = arith.constant 1.000000e+00 : f32
    %21 = vector.broadcast %cst_6 : f32 to vector<16x128xf32>
    %22 = arith.divf %21, %20 : vector<16x128xf32>
    %23 = arith.mulf %15, %22 : vector<16x128xf32>
    %24 = vector.extract_strided_slice %23 {offsets = [0, 0], sizes = [8, 128], strides = [1, 1]} : vector<16x128xf32> to vector<8x128xf32>
    %25 = vector.extract_strided_slice %23 {offsets = [8, 0], sizes = [8, 128], strides = [1, 1]} : vector<16x128xf32> to vector<8x128xf32>
    %c0_7 = arith.constant 0 : index
    %c0_8 = arith.constant 0 : index
    %26 = vector.load %arg5[%c0_7, %c0_8] : memref<4x8xf32, #tpu.memory_space<vmem>>, vector<4x8xf32>
    %c0_9 = arith.constant 0 : index
    %c0_10 = arith.constant 0 : index
    %27 = vector.load %arg6[%c0_9, %c0_10] : memref<4x1xf32, #tpu.memory_space<vmem>>, vector<4x1xf32>
    %28 = vector.extract_strided_slice %26 {offsets = [0, 0], sizes = [4, 1], strides = [1, 1]} : vector<4x8xf32> to vector<4x1xf32>
    %29 = vector.extract_strided_slice %24 {offsets = [0, 0], sizes = [1, 128], strides = [1, 1]} : vector<8x128xf32> to vector<1x128xf32>
    %30 = vector.broadcast %28 : vector<4x1xf32> to vector<4x128xf32>
    %31 = vector.broadcast %29 : vector<1x128xf32> to vector<4x128xf32>
    %32 = arith.mulf %30, %31 : vector<4x128xf32>
    %33 = vector.broadcast %27 : vector<4x1xf32> to vector<4x128xf32>
    %34 = arith.addf %33, %32 : vector<4x128xf32>
    %35 = vector.extract_strided_slice %26 {offsets = [0, 1], sizes = [4, 1], strides = [1, 1]} : vector<4x8xf32> to vector<4x1xf32>
    %36 = vector.extract_strided_slice %24 {offsets = [1, 0], sizes = [1, 128], strides = [1, 1]} : vector<8x128xf32> to vector<1x128xf32>
    %37 = vector.broadcast %35 : vector<4x1xf32> to vector<4x128xf32>
    %38 = vector.broadcast %36 : vector<1x128xf32> to vector<4x128xf32>
    %39 = arith.mulf %37, %38 : vector<4x128xf32>
    %40 = arith.addf %34, %39 : vector<4x128xf32>
    %41 = vector.extract_strided_slice %26 {offsets = [0, 2], sizes = [4, 1], strides = [1, 1]} : vector<4x8xf32> to vector<4x1xf32>
    %42 = vector.extract_strided_slice %24 {offsets = [2, 0], sizes = [1, 128], strides = [1, 1]} : vector<8x128xf32> to vector<1x128xf32>
    %43 = vector.broadcast %41 : vector<4x1xf32> to vector<4x128xf32>
    %44 = vector.broadcast %42 : vector<1x128xf32> to vector<4x128xf32>
    %45 = arith.mulf %43, %44 : vector<4x128xf32>
    %46 = arith.addf %40, %45 : vector<4x128xf32>
    %47 = vector.extract_strided_slice %26 {offsets = [0, 3], sizes = [4, 1], strides = [1, 1]} : vector<4x8xf32> to vector<4x1xf32>
    %48 = vector.extract_strided_slice %24 {offsets = [3, 0], sizes = [1, 128], strides = [1, 1]} : vector<8x128xf32> to vector<1x128xf32>
    %49 = vector.broadcast %47 : vector<4x1xf32> to vector<4x128xf32>
    %50 = vector.broadcast %48 : vector<1x128xf32> to vector<4x128xf32>
    %51 = arith.mulf %49, %50 : vector<4x128xf32>
    %52 = arith.addf %46, %51 : vector<4x128xf32>
    %53 = vector.extract_strided_slice %26 {offsets = [0, 4], sizes = [4, 1], strides = [1, 1]} : vector<4x8xf32> to vector<4x1xf32>
    %54 = vector.extract_strided_slice %24 {offsets = [4, 0], sizes = [1, 128], strides = [1, 1]} : vector<8x128xf32> to vector<1x128xf32>
    %55 = vector.broadcast %53 : vector<4x1xf32> to vector<4x128xf32>
    %56 = vector.broadcast %54 : vector<1x128xf32> to vector<4x128xf32>
    %57 = arith.mulf %55, %56 : vector<4x128xf32>
    %58 = arith.addf %52, %57 : vector<4x128xf32>
    %59 = vector.extract_strided_slice %26 {offsets = [0, 5], sizes = [4, 1], strides = [1, 1]} : vector<4x8xf32> to vector<4x1xf32>
    %60 = vector.extract_strided_slice %24 {offsets = [5, 0], sizes = [1, 128], strides = [1, 1]} : vector<8x128xf32> to vector<1x128xf32>
    %61 = vector.broadcast %59 : vector<4x1xf32> to vector<4x128xf32>
    %62 = vector.broadcast %60 : vector<1x128xf32> to vector<4x128xf32>
    %63 = arith.mulf %61, %62 : vector<4x128xf32>
    %64 = arith.addf %58, %63 : vector<4x128xf32>
    %65 = vector.extract_strided_slice %26 {offsets = [0, 6], sizes = [4, 1], strides = [1, 1]} : vector<4x8xf32> to vector<4x1xf32>
    %66 = vector.extract_strided_slice %24 {offsets = [6, 0], sizes = [1, 128], strides = [1, 1]} : vector<8x128xf32> to vector<1x128xf32>
    %67 = vector.broadcast %65 : vector<4x1xf32> to vector<4x128xf32>
    %68 = vector.broadcast %66 : vector<1x128xf32> to vector<4x128xf32>
    %69 = arith.mulf %67, %68 : vector<4x128xf32>
    %70 = arith.addf %64, %69 : vector<4x128xf32>
    %71 = vector.extract_strided_slice %26 {offsets = [0, 7], sizes = [4, 1], strides = [1, 1]} : vector<4x8xf32> to vector<4x1xf32>
    %72 = vector.extract_strided_slice %24 {offsets = [7, 0], sizes = [1, 128], strides = [1, 1]} : vector<8x128xf32> to vector<1x128xf32>
    %73 = vector.broadcast %71 : vector<4x1xf32> to vector<4x128xf32>
    %74 = vector.broadcast %72 : vector<1x128xf32> to vector<4x128xf32>
    %75 = arith.mulf %73, %74 : vector<4x128xf32>
    %76 = arith.addf %70, %75 : vector<4x128xf32>
    %cst_11 = arith.constant 0.000000e+00 : f32
    %77 = vector.broadcast %cst_11 : f32 to vector<4x128xf32>
    %78 = arith.subf %77, %76 : vector<4x128xf32>
    %79 = math.exp %78 : vector<4x128xf32>
    %cst_12 = arith.constant 1.000000e+00 : f32
    %80 = vector.broadcast %cst_12 : f32 to vector<4x128xf32>
    %81 = arith.addf %80, %79 : vector<4x128xf32>
    %cst_13 = arith.constant 1.000000e+00 : f32
    %82 = vector.broadcast %cst_13 : f32 to vector<4x128xf32>
    %83 = arith.divf %82, %81 : vector<4x128xf32>
    %84 = arith.mulf %76, %83 : vector<4x128xf32>
    %c0_14 = arith.constant 0 : index
    %c0_15 = arith.constant 0 : index
    %85 = vector.load %arg9[%c0_14, %c0_15] : memref<4x8xf32, #tpu.memory_space<vmem>>, vector<4x8xf32>
    %c0_16 = arith.constant 0 : index
    %c0_17 = arith.constant 0 : index
    %86 = vector.load %arg10[%c0_16, %c0_17] : memref<4x1xf32, #tpu.memory_space<vmem>>, vector<4x1xf32>
    %87 = vector.extract_strided_slice %85 {offsets = [0, 0], sizes = [4, 1], strides = [1, 1]} : vector<4x8xf32> to vector<4x1xf32>
    %88 = vector.extract_strided_slice %25 {offsets = [0, 0], sizes = [1, 128], strides = [1, 1]} : vector<8x128xf32> to vector<1x128xf32>
    %89 = vector.broadcast %87 : vector<4x1xf32> to vector<4x128xf32>
    %90 = vector.broadcast %88 : vector<1x128xf32> to vector<4x128xf32>
    %91 = arith.mulf %89, %90 : vector<4x128xf32>
    %92 = vector.broadcast %86 : vector<4x1xf32> to vector<4x128xf32>
    %93 = arith.addf %92, %91 : vector<4x128xf32>
    %94 = vector.extract_strided_slice %85 {offsets = [0, 1], sizes = [4, 1], strides = [1, 1]} : vector<4x8xf32> to vector<4x1xf32>
    %95 = vector.extract_strided_slice %25 {offsets = [1, 0], sizes = [1, 128], strides = [1, 1]} : vector<8x128xf32> to vector<1x128xf32>
    %96 = vector.broadcast %94 : vector<4x1xf32> to vector<4x128xf32>
    %97 = vector.broadcast %95 : vector<1x128xf32> to vector<4x128xf32>
    %98 = arith.mulf %96, %97 : vector<4x128xf32>
    %99 = arith.addf %93, %98 : vector<4x128xf32>
    %100 = vector.extract_strided_slice %85 {offsets = [0, 2], sizes = [4, 1], strides = [1, 1]} : vector<4x8xf32> to vector<4x1xf32>
    %101 = vector.extract_strided_slice %25 {offsets = [2, 0], sizes = [1, 128], strides = [1, 1]} : vector<8x128xf32> to vector<1x128xf32>
    %102 = vector.broadcast %100 : vector<4x1xf32> to vector<4x128xf32>
    %103 = vector.broadcast %101 : vector<1x128xf32> to vector<4x128xf32>
    %104 = arith.mulf %102, %103 : vector<4x128xf32>
    %105 = arith.addf %99, %104 : vector<4x128xf32>
    %106 = vector.extract_strided_slice %85 {offsets = [0, 3], sizes = [4, 1], strides = [1, 1]} : vector<4x8xf32> to vector<4x1xf32>
    %107 = vector.extract_strided_slice %25 {offsets = [3, 0], sizes = [1, 128], strides = [1, 1]} : vector<8x128xf32> to vector<1x128xf32>
    %108 = vector.broadcast %106 : vector<4x1xf32> to vector<4x128xf32>
    %109 = vector.broadcast %107 : vector<1x128xf32> to vector<4x128xf32>
    %110 = arith.mulf %108, %109 : vector<4x128xf32>
    %111 = arith.addf %105, %110 : vector<4x128xf32>
    %112 = vector.extract_strided_slice %85 {offsets = [0, 4], sizes = [4, 1], strides = [1, 1]} : vector<4x8xf32> to vector<4x1xf32>
    %113 = vector.extract_strided_slice %25 {offsets = [4, 0], sizes = [1, 128], strides = [1, 1]} : vector<8x128xf32> to vector<1x128xf32>
    %114 = vector.broadcast %112 : vector<4x1xf32> to vector<4x128xf32>
    %115 = vector.broadcast %113 : vector<1x128xf32> to vector<4x128xf32>
    %116 = arith.mulf %114, %115 : vector<4x128xf32>
    %117 = arith.addf %111, %116 : vector<4x128xf32>
    %118 = vector.extract_strided_slice %85 {offsets = [0, 5], sizes = [4, 1], strides = [1, 1]} : vector<4x8xf32> to vector<4x1xf32>
    %119 = vector.extract_strided_slice %25 {offsets = [5, 0], sizes = [1, 128], strides = [1, 1]} : vector<8x128xf32> to vector<1x128xf32>
    %120 = vector.broadcast %118 : vector<4x1xf32> to vector<4x128xf32>
    %121 = vector.broadcast %119 : vector<1x128xf32> to vector<4x128xf32>
    %122 = arith.mulf %120, %121 : vector<4x128xf32>
    %123 = arith.addf %117, %122 : vector<4x128xf32>
    %124 = vector.extract_strided_slice %85 {offsets = [0, 6], sizes = [4, 1], strides = [1, 1]} : vector<4x8xf32> to vector<4x1xf32>
    %125 = vector.extract_strided_slice %25 {offsets = [6, 0], sizes = [1, 128], strides = [1, 1]} : vector<8x128xf32> to vector<1x128xf32>
    %126 = vector.broadcast %124 : vector<4x1xf32> to vector<4x128xf32>
    %127 = vector.broadcast %125 : vector<1x128xf32> to vector<4x128xf32>
    %128 = arith.mulf %126, %127 : vector<4x128xf32>
    %129 = arith.addf %123, %128 : vector<4x128xf32>
    %130 = vector.extract_strided_slice %85 {offsets = [0, 7], sizes = [4, 1], strides = [1, 1]} : vector<4x8xf32> to vector<4x1xf32>
    %131 = vector.extract_strided_slice %25 {offsets = [7, 0], sizes = [1, 128], strides = [1, 1]} : vector<8x128xf32> to vector<1x128xf32>
    %132 = vector.broadcast %130 : vector<4x1xf32> to vector<4x128xf32>
    %133 = vector.broadcast %131 : vector<1x128xf32> to vector<4x128xf32>
    %134 = arith.mulf %132, %133 : vector<4x128xf32>
    %135 = arith.addf %129, %134 : vector<4x128xf32>
    %cst_18 = arith.constant 0.000000e+00 : f32
    %136 = vector.broadcast %cst_18 : f32 to vector<4x128xf32>
    %137 = arith.subf %136, %135 : vector<4x128xf32>
    %138 = math.exp %137 : vector<4x128xf32>
    %cst_19 = arith.constant 1.000000e+00 : f32
    %139 = vector.broadcast %cst_19 : f32 to vector<4x128xf32>
    %140 = arith.addf %139, %138 : vector<4x128xf32>
    %cst_20 = arith.constant 1.000000e+00 : f32
    %141 = vector.broadcast %cst_20 : f32 to vector<4x128xf32>
    %142 = arith.divf %141, %140 : vector<4x128xf32>
    %143 = arith.mulf %135, %142 : vector<4x128xf32>
    %c0_21 = arith.constant 0 : index
    %c0_22 = arith.constant 0 : index
    %144 = vector.load %arg7[%c0_21, %c0_22] : memref<8x4xf32, #tpu.memory_space<vmem>>, vector<8x4xf32>
    %c0_23 = arith.constant 0 : index
    %c0_24 = arith.constant 0 : index
    %145 = vector.load %arg8[%c0_23, %c0_24] : memref<8x1xf32, #tpu.memory_space<vmem>>, vector<8x1xf32>
    %146 = vector.extract_strided_slice %144 {offsets = [0, 0], sizes = [8, 1], strides = [1, 1]} : vector<8x4xf32> to vector<8x1xf32>
    %147 = vector.extract_strided_slice %84 {offsets = [0, 0], sizes = [1, 128], strides = [1, 1]} : vector<4x128xf32> to vector<1x128xf32>
    %148 = vector.broadcast %146 : vector<8x1xf32> to vector<8x128xf32>
    %149 = vector.broadcast %147 : vector<1x128xf32> to vector<8x128xf32>
    %150 = arith.mulf %148, %149 : vector<8x128xf32>
    %151 = vector.broadcast %145 : vector<8x1xf32> to vector<8x128xf32>
    %152 = arith.addf %151, %150 : vector<8x128xf32>
    %153 = vector.extract_strided_slice %144 {offsets = [0, 1], sizes = [8, 1], strides = [1, 1]} : vector<8x4xf32> to vector<8x1xf32>
    %154 = vector.extract_strided_slice %84 {offsets = [1, 0], sizes = [1, 128], strides = [1, 1]} : vector<4x128xf32> to vector<1x128xf32>
    %155 = vector.broadcast %153 : vector<8x1xf32> to vector<8x128xf32>
    %156 = vector.broadcast %154 : vector<1x128xf32> to vector<8x128xf32>
    %157 = arith.mulf %155, %156 : vector<8x128xf32>
    %158 = arith.addf %152, %157 : vector<8x128xf32>
    %159 = vector.extract_strided_slice %144 {offsets = [0, 2], sizes = [8, 1], strides = [1, 1]} : vector<8x4xf32> to vector<8x1xf32>
    %160 = vector.extract_strided_slice %84 {offsets = [2, 0], sizes = [1, 128], strides = [1, 1]} : vector<4x128xf32> to vector<1x128xf32>
    %161 = vector.broadcast %159 : vector<8x1xf32> to vector<8x128xf32>
    %162 = vector.broadcast %160 : vector<1x128xf32> to vector<8x128xf32>
    %163 = arith.mulf %161, %162 : vector<8x128xf32>
    %164 = arith.addf %158, %163 : vector<8x128xf32>
    %165 = vector.extract_strided_slice %144 {offsets = [0, 3], sizes = [8, 1], strides = [1, 1]} : vector<8x4xf32> to vector<8x1xf32>
    %166 = vector.extract_strided_slice %84 {offsets = [3, 0], sizes = [1, 128], strides = [1, 1]} : vector<4x128xf32> to vector<1x128xf32>
    %167 = vector.broadcast %165 : vector<8x1xf32> to vector<8x128xf32>
    %168 = vector.broadcast %166 : vector<1x128xf32> to vector<8x128xf32>
    %169 = arith.mulf %167, %168 : vector<8x128xf32>
    %170 = arith.addf %164, %169 : vector<8x128xf32>
    %c0_25 = arith.constant 0 : index
    %c0_26 = arith.constant 0 : index
    %171 = vector.load %arg11[%c0_25, %c0_26] : memref<8x4xf32, #tpu.memory_space<vmem>>, vector<8x4xf32>
    %c0_27 = arith.constant 0 : index
    %c0_28 = arith.constant 0 : index
    %172 = vector.load %arg12[%c0_27, %c0_28] : memref<8x1xf32, #tpu.memory_space<vmem>>, vector<8x1xf32>
    %173 = vector.extract_strided_slice %171 {offsets = [0, 0], sizes = [8, 1], strides = [1, 1]} : vector<8x4xf32> to vector<8x1xf32>
    %174 = vector.extract_strided_slice %143 {offsets = [0, 0], sizes = [1, 128], strides = [1, 1]} : vector<4x128xf32> to vector<1x128xf32>
    %175 = vector.broadcast %173 : vector<8x1xf32> to vector<8x128xf32>
    %176 = vector.broadcast %174 : vector<1x128xf32> to vector<8x128xf32>
    %177 = arith.mulf %175, %176 : vector<8x128xf32>
    %178 = vector.broadcast %172 : vector<8x1xf32> to vector<8x128xf32>
    %179 = arith.addf %178, %177 : vector<8x128xf32>
    %180 = vector.extract_strided_slice %171 {offsets = [0, 1], sizes = [8, 1], strides = [1, 1]} : vector<8x4xf32> to vector<8x1xf32>
    %181 = vector.extract_strided_slice %143 {offsets = [1, 0], sizes = [1, 128], strides = [1, 1]} : vector<4x128xf32> to vector<1x128xf32>
    %182 = vector.broadcast %180 : vector<8x1xf32> to vector<8x128xf32>
    %183 = vector.broadcast %181 : vector<1x128xf32> to vector<8x128xf32>
    %184 = arith.mulf %182, %183 : vector<8x128xf32>
    %185 = arith.addf %179, %184 : vector<8x128xf32>
    %186 = vector.extract_strided_slice %171 {offsets = [0, 2], sizes = [8, 1], strides = [1, 1]} : vector<8x4xf32> to vector<8x1xf32>
    %187 = vector.extract_strided_slice %143 {offsets = [2, 0], sizes = [1, 128], strides = [1, 1]} : vector<4x128xf32> to vector<1x128xf32>
    %188 = vector.broadcast %186 : vector<8x1xf32> to vector<8x128xf32>
    %189 = vector.broadcast %187 : vector<1x128xf32> to vector<8x128xf32>
    %190 = arith.mulf %188, %189 : vector<8x128xf32>
    %191 = arith.addf %185, %190 : vector<8x128xf32>
    %192 = vector.extract_strided_slice %171 {offsets = [0, 3], sizes = [8, 1], strides = [1, 1]} : vector<8x4xf32> to vector<8x1xf32>
    %193 = vector.extract_strided_slice %143 {offsets = [3, 0], sizes = [1, 128], strides = [1, 1]} : vector<4x128xf32> to vector<1x128xf32>
    %194 = vector.broadcast %192 : vector<8x1xf32> to vector<8x128xf32>
    %195 = vector.broadcast %193 : vector<1x128xf32> to vector<8x128xf32>
    %196 = arith.mulf %194, %195 : vector<8x128xf32>
    %197 = arith.addf %191, %196 : vector<8x128xf32>
    %c0_29 = arith.constant 0 : index
    %c0_30 = arith.constant 0 : index
    %198 = vector.load %arg13[%c0_29, %c0_30] : memref<8x128xf32, #tpu.memory_space<vmem>>, vector<8x128xf32>
    %c0_31 = arith.constant 0 : index
    %c0_32 = arith.constant 0 : index
    %199 = vector.load %arg14[%c0_31, %c0_32] : memref<8x128xf32, #tpu.memory_space<vmem>>, vector<8x128xf32>
    %200 = arith.mulf %170, %198 : vector<8x128xf32>
    %201 = arith.mulf %197, %199 : vector<8x128xf32>
    %202 = arith.subf %200, %201 : vector<8x128xf32>
    %c0_33 = arith.constant 0 : index
    %c0_34 = arith.constant 0 : index
    %203 = vector.load %arg15[%c0_33, %c0_34] : memref<8x128xf32, #tpu.memory_space<vmem>>, vector<8x128xf32>
    tpu.vector_store %arg15[%c0_33, %c0_34], %202 {strides = array<i32>} : memref<8x128xf32, #tpu.memory_space<vmem>>, vector<8x128xf32>,
    %204 = arith.mulf %170, %199 : vector<8x128xf32>
    %205 = arith.mulf %197, %198 : vector<8x128xf32>
    %206 = arith.addf %204, %205 : vector<8x128xf32>
    %c0_35 = arith.constant 0 : index
    %c0_36 = arith.constant 0 : index
    %207 = vector.load %arg16[%c0_35, %c0_36] : memref<8x128xf32, #tpu.memory_space<vmem>>, vector<8x128xf32>
    tpu.vector_store %arg16[%c0_35, %c0_36], %206 {strides = array<i32>} : memref<8x128xf32, #tpu.memory_space<vmem>>, vector<8x128xf32>,
    return
  }
  func.func @transform_0(%arg0: i32, %arg1: i32) -> (i32, i32) {
    %c0_i32 = arith.constant 0 : i32
    %c0_i32_0 = arith.constant 0 : i32
    return %c0_i32, %arg1 : i32, i32
  }
  func.func @transform_1(%arg0: i32, %arg1: i32) -> (i32, i32) {
    %c0_i32 = arith.constant 0 : i32
    %c0_i32_0 = arith.constant 0 : i32
    %c0_i32_1 = arith.constant 0 : i32
    return %c0_i32, %c0_i32_0 : i32, i32
  }
  func.func @transform_2(%arg0: i32, %arg1: i32) -> (i32, i32) {
    %c0_i32 = arith.constant 0 : i32
    %c0_i32_0 = arith.constant 0 : i32
    %c0_i32_1 = arith.constant 0 : i32
    return %c0_i32, %c0_i32_0 : i32, i32
  }
  func.func @transform_3(%arg0: i32, %arg1: i32) -> (i32, i32) {
    %c0_i32 = arith.constant 0 : i32
    %c0_i32_0 = arith.constant 0 : i32
    %c0_i32_1 = arith.constant 0 : i32
    return %c0_i32, %c0_i32_0 : i32, i32
  }
  func.func @transform_4(%arg0: i32, %arg1: i32) -> (i32, i32) {
    %c0_i32 = arith.constant 0 : i32
    %c0_i32_0 = arith.constant 0 : i32
    %c0_i32_1 = arith.constant 0 : i32
    return %c0_i32, %c0_i32_0 : i32, i32
  }
  func.func @transform_5(%arg0: i32, %arg1: i32) -> (i32, i32) {
    %c0_i32 = arith.constant 0 : i32
    %c0_i32_0 = arith.constant 0 : i32
    %c0_i32_1 = arith.constant 0 : i32
    return %c0_i32, %c0_i32_0 : i32, i32
  }
  func.func @transform_6(%arg0: i32, %arg1: i32) -> (i32, i32) {
    %c0_i32 = arith.constant 0 : i32
    %c0_i32_0 = arith.constant 0 : i32
    %c0_i32_1 = arith.constant 0 : i32
    return %c0_i32, %c0_i32_0 : i32, i32
  }
  func.func @transform_7(%arg0: i32, %arg1: i32) -> (i32, i32) {
    %c0_i32 = arith.constant 0 : i32
    %c0_i32_0 = arith.constant 0 : i32
    %c0_i32_1 = arith.constant 0 : i32
    return %c0_i32, %c0_i32_0 : i32, i32
  }
  func.func @transform_8(%arg0: i32, %arg1: i32) -> (i32, i32) {
    %c0_i32 = arith.constant 0 : i32
    %c0_i32_0 = arith.constant 0 : i32
    %c0_i32_1 = arith.constant 0 : i32
    return %c0_i32, %c0_i32_0 : i32, i32
  }
  func.func @transform_9(%arg0: i32, %arg1: i32) -> (i32, i32) {
    %c0_i32 = arith.constant 0 : i32
    %c0_i32_0 = arith.constant 0 : i32
    %c0_i32_1 = arith.constant 0 : i32
    return %c0_i32, %c0_i32_0 : i32, i32
  }
  func.func @transform_10(%arg0: i32, %arg1: i32) -> (i32, i32) {
    %c0_i32 = arith.constant 0 : i32
    %c0_i32_0 = arith.constant 0 : i32
    %c0_i32_1 = arith.constant 0 : i32
    return %c0_i32, %c0_i32_0 : i32, i32
  }
  func.func @transform_11(%arg0: i32, %arg1: i32) -> (i32, i32) {
    %c0_i32 = arith.constant 0 : i32
    return %arg0, %arg1 : i32, i32
  }
  func.func @transform_12(%arg0: i32, %arg1: i32) -> (i32, i32) {
    %c0_i32 = arith.constant 0 : i32
    return %arg0, %arg1 : i32, i32
  }
  func.func @transform_13(%arg0: i32, %arg1: i32) -> (i32, i32) {
    %c0_i32 = arith.constant 0 : i32
    return %arg0, %arg1 : i32, i32
  }
  func.func @transform_14(%arg0: i32, %arg1: i32) -> (i32, i32) {
    %c0_i32 = arith.constant 0 : i32
    return %arg0, %arg1 : i32, i32
  }
}

</mosaic_0001>

<llo_original>
// kernel: tpu_custom_call.1
$region0: #{tpu_custom_call.1}
  #allocation0 [shape = 'u32[]', space=smem, size = 0x4, offset = 0x4, fixed_abs, tag = 'smem constant byte address 0x4 - core index']
  #allocation1 [shape = 'u32[144,128]{1,0:T(1,128)}', space=vmem, size = 0x12000, scoped, tag = 'internal scratch']
  %s0 = inlined_call_operand.vmem [shape: f32[2,256], index: 0, kind: input, shape index: {}]
  %s1 = inlined_call_operand.vmem [shape: f32[16,2], index: 1, kind: input, shape index: {}]
  %s2 = inlined_call_operand.vmem [shape: f32[16,1], index: 2, kind: input, shape index: {}]
  %s3 = inlined_call_operand.vmem [shape: f32[4,8], index: 3, kind: input, shape index: {}]
  %s4 = inlined_call_operand.vmem [shape: f32[4,1], index: 4, kind: input, shape index: {}]
  %s5 = inlined_call_operand.vmem [shape: f32[8,4], index: 5, kind: input, shape index: {}]
  %s6 = inlined_call_operand.vmem [shape: f32[8,1], index: 6, kind: input, shape index: {}]
  %s7 = inlined_call_operand.vmem [shape: f32[4,8], index: 7, kind: input, shape index: {}]
  %s8 = inlined_call_operand.vmem [shape: f32[4,1], index: 8, kind: input, shape index: {}]
  %s9 = inlined_call_operand.vmem [shape: f32[8,4], index: 9, kind: input, shape index: {}]
  %s10 = inlined_call_operand.vmem [shape: f32[8,1], index: 10, kind: input, shape index: {}]
  %s11 = inlined_call_operand.vmem [shape: f32[8,256], index: 11, kind: input, shape index: {}]
  %s12 = inlined_call_operand.vmem [shape: f32[8,256], index: 12, kind: input, shape index: {}]
  %s13 = inlined_call_operand.hbm [shape: f32[8,256], index: 13, kind: output, shape index: {0}]
  %s14 = inlined_call_operand.hbm [shape: f32[8,256], index: 14, kind: output, shape index: {1}]
  %15 = xla_tuple %s13, %s14
  %s16 = sld [smem:[#allocation0]]
  $region93: #{tpu_custom_call.1} parent=0
    _
  %s18 = ssub.s32 1, %s16
  %s19 = scalar_select 0, %s18, %s16
  $region1: #{tpu_custom_call.1} parent=0
    #allocation2 [shape = 'u8[8192]{0}', space=vmem, size = 0x2000, scoped, tag = 'output window, operand 0']
    #allocation3 [shape = 's32[2]{0}', space=sflag, size = 0x8, scoped, tag = 'scoped memory for tpu_custom_call.1']
    #allocation4 [shape = 'u8[8192]{0}', space=vmem, size = 0x2000, scoped, tag = 'output window, operand 1']
    #allocation5 [shape = 's32[2]{0}', space=sflag, size = 0x8, scoped, tag = 'scoped memory for tpu_custom_call.1']
    %20 = vsyncpa [#allocation3], 0
    %s21 = scalar_lea.sflag [#allocation3], 1
    %22 = vsyncpa %s21, 0
    %23 = vsyncpa [#allocation5], 0
    %s24 = scalar_lea.sflag [#allocation5], 1
    %25 = vsyncpa %s24, 0
    loop: start=0, step=1, limit=4
    $region2: #{tpu_custom_call.1} parent=1 // loop_pre_header
      _
    $region3: #{tpu_custom_call.1} parent=1 // loop_header
      %s27 = sphi 0, %s31
      %p28 = scmp.ge.s32.totalorder %s27, 4
      %s34 = sphi 0, %s46
      %s35 = sphi 0, %s42
      %s36 = sphi 0, %s34
      %s37 = sphi 0, %s35
      %s38 = sphi 0, %s36
      %s39 = sphi 0, %s37
      %s49 = sphi 0, %s51
      %s52 = sphi 0, %s49
      %s53 = sphi 0, %s52
      %s69 = sphi 0, %s53
      %s73 = sphi 0, %s73
      %s75 = sphi 0, %s73
      %s76 = sphi 0, %s75
      %s90 = sphi 0, %s76
      %s94 = sphi 0, %s94
      %s96 = sphi 0, %s94
      %s97 = sphi 0, %s96
      %s111 = sphi 0, %s97
      %s115 = sphi 0, %s115
      %s117 = sphi 0, %s115
      %s118 = sphi 0, %s117
      %s132 = sphi 0, %s118
      %s136 = sphi 0, %s136
      %s138 = sphi 0, %s136
      %s139 = sphi 0, %s138
      %s153 = sphi 0, %s139
      %s157 = sphi 0, %s157
      %s159 = sphi 0, %s157
      %s160 = sphi 0, %s159
      %s174 = sphi 0, %s160
      %s178 = sphi 0, %s178
      %s180 = sphi 0, %s178
      %s181 = sphi 0, %s180
      %s195 = sphi 0, %s181
      %s199 = sphi 0, %s199
      %s201 = sphi 0, %s199
      %s202 = sphi 0, %s201
      %s216 = sphi 0, %s202
      %s220 = sphi 0, %s220
      %s222 = sphi 0, %s220
      %s223 = sphi 0, %s222
      %s237 = sphi 0, %s223
      %s241 = sphi 0, %s241
      %s243 = sphi 0, %s241
      %s244 = sphi 0, %s243
      %s258 = sphi 0, %s244
      %s262 = sphi 0, %s262
      %s264 = sphi 0, %s262
      %s265 = sphi 0, %s264
      %s279 = sphi 0, %s265
      %s287 = sphi 0, %s289
      %s290 = sphi 0, %s287
      %s291 = sphi 0, %s290
      %s307 = sphi 0, %s291
      %s315 = sphi 0, %s317
      %s318 = sphi 0, %s315
      %s319 = sphi 0, %s318
      %s335 = sphi 0, %s319
      %s343 = sphi 0, %s345
      %s346 = sphi 0, %s343
      %s347 = sphi 0, %s346
      %s363 = sphi 0, %s347
      %s371 = sphi 0, %s373
      %s374 = sphi 0, %s371
      %s375 = sphi 0, %s374
      %s391 = sphi 0, %s375
    $region4: #{tpu_custom_call.1} parent=1 // loop_header_branch
      %30 = sbr.rel (%p28) target = $region8
    $region5: #{tpu_custom_call.1} parent=1 // loop_body
      %s32 = ssub.s32 %s27, 1
      %s33 = ssub.s32 %s27, 2
      %s40 = sadd.s32 1, %s35
      %p41 = scmp.ge.s32.totalorder %s40, 2
      %s42 = scalar_select %p41, 0, %s40
      %s43 = sadd.s32 1, %s34
      %s44 = scalar_select %p41, %s43, %s34
      %p45 = scmp.ge.s32.totalorder %s44, 1
      %s46 = scalar_select %p45, 0, %s44
      %s47 = ssub.s32 %s35, %s42
      %p48 = scmp.eq.s32.totalorder %s47, 0
      %s50 = sadd.s32 %s49, 1
      %s51 = scalar_select %p48, %s49, %s50
      %p54 = pneg %p48
      %p55 = scmp.eq.s32.totalorder %s27, 1
      %p56 = por %p54, %p55
      %p57 = scmp.ne.s32.totalorder %s49, %s52
      %p58 = scmp.eq.s32.totalorder %s27, 0
      %p59 = por %p57, %p58
      %p60 = scmp.ne.s32.totalorder %s49, %s52
      %p61 = scmp.eq.s32.totalorder %s32, 1
      %p62 = por %p60, %p61
      %p63 = scmp.ne.s32.totalorder %s52, %s53
      %p64 = scmp.eq.s32.totalorder %s32, 0
      %p65 = por %p63, %p64
      %p66 = scmp.ne.s32.totalorder %s52, %s53
      %p67 = scmp.eq.s32.totalorder %s33, 1
      %p68 = por %p66, %p67
      %p70 = scmp.ne.s32.totalorder %s53, %s69
      %p71 = scmp.eq.s32.totalorder %s33, 0
      %p72 = por %p70, %p71
      %s74 = sadd.s32 %s73, 1
      %p77 = scmp.eq.s32.totalorder %s27, 1
      %p78 = scmp.ne.s32.totalorder %s73, %s75
      %p79 = scmp.eq.s32.totalorder %s27, 0
      %p80 = por %p78, %p79
      %p81 = scmp.ne.s32.totalorder %s73, %s75
      %p82 = scmp.eq.s32.totalorder %s32, 1
      %p83 = por %p81, %p82
      %p84 = scmp.ne.s32.totalorder %s75, %s76
      %p85 = scmp.eq.s32.totalorder %s32, 0
      %p86 = por %p84, %p85
      %p87 = scmp.ne.s32.totalorder %s75, %s76
      %p88 = scmp.eq.s32.totalorder %s33, 1
      %p89 = por %p87, %p88
      %p91 = scmp.ne.s32.totalorder %s76, %s90
      %p92 = scmp.eq.s32.totalorder %s33, 0
      %p93 = por %p91, %p92
      %s95 = sadd.s32 %s94, 1
      %p98 = scmp.eq.s32.totalorder %s27, 1
      %p99 = scmp.ne.s32.totalorder %s94, %s96
      %p100 = scmp.eq.s32.totalorder %s27, 0
      %p101 = por %p99, %p100
      %p102 = scmp.ne.s32.totalorder %s94, %s96
      %p103 = scmp.eq.s32.totalorder %s32, 1
      %p104 = por %p102, %p103
      %p105 = scmp.ne.s32.totalorder %s96, %s97
      %p106 = scmp.eq.s32.totalorder %s32, 0
      %p107 = por %p105, %p106
      %p108 = scmp.ne.s32.totalorder %s96, %s97
      %p109 = scmp.eq.s32.totalorder %s33, 1
      %p110 = por %p108, %p109
      %p112 = scmp.ne.s32.totalorder %s97, %s111
      %p113 = scmp.eq.s32.totalorder %s33, 0
      %p114 = por %p112, %p113
      %s116 = sadd.s32 %s115, 1
      %p119 = scmp.eq.s32.totalorder %s27, 1
      %p120 = scmp.ne.s32.totalorder %s115, %s117
      %p121 = scmp.eq.s32.totalorder %s27, 0
      %p122 = por %p120, %p121
      %p123 = scmp.ne.s32.totalorder %s115, %s117
      %p124 = scmp.eq.s32.totalorder %s32, 1
      %p125 = por %p123, %p124
      %p126 = scmp.ne.s32.totalorder %s117, %s118
      %p127 = scmp.eq.s32.totalorder %s32, 0
      %p128 = por %p126, %p127
      %p129 = scmp.ne.s32.totalorder %s117, %s118
      %p130 = scmp.eq.s32.totalorder %s33, 1
      %p131 = por %p129, %p130
      %p133 = scmp.ne.s32.totalorder %s118, %s132
      %p134 = scmp.eq.s32.totalorder %s33, 0
      %p135 = por %p133, %p134
      %s137 = sadd.s32 %s136, 1
      %p140 = scmp.eq.s32.totalorder %s27, 1
      %p141 = scmp.ne.s32.totalorder %s136, %s138
      %p142 = scmp.eq.s32.totalorder %s27, 0
      %p143 = por %p141, %p142
      %p144 = scmp.ne.s32.totalorder %s136, %s138
      %p145 = scmp.eq.s32.totalorder %s32, 1
      %p146 = por %p144, %p145
      %p147 = scmp.ne.s32.totalorder %s138, %s139
      %p148 = scmp.eq.s32.totalorder %s32, 0
      %p149 = por %p147, %p148
      %p150 = scmp.ne.s32.totalorder %s138, %s139
      %p151 = scmp.eq.s32.totalorder %s33, 1
      %p152 = por %p150, %p151
      %p154 = scmp.ne.s32.totalorder %s139, %s153
      %p155 = scmp.eq.s32.totalorder %s33, 0
      %p156 = por %p154, %p155
      %s158 = sadd.s32 %s157, 1
      %p161 = scmp.eq.s32.totalorder %s27, 1
      %p162 = scmp.ne.s32.totalorder %s157, %s159
      %p163 = scmp.eq.s32.totalorder %s27, 0
      %p164 = por %p162, %p163
      %p165 = scmp.ne.s32.totalorder %s157, %s159
      %p166 = scmp.eq.s32.totalorder %s32, 1
      %p167 = por %p165, %p166
      %p168 = scmp.ne.s32.totalorder %s159, %s160
      %p169 = scmp.eq.s32.totalorder %s32, 0
      %p170 = por %p168, %p169
      %p171 = scmp.ne.s32.totalorder %s159, %s160
      %p172 = scmp.eq.s32.totalorder %s33, 1
      %p173 = por %p171, %p172
      %p175 = scmp.ne.s32.totalorder %s160, %s174
      %p176 = scmp.eq.s32.totalorder %s33, 0
      %p177 = por %p175, %p176
      %s179 = sadd.s32 %s178, 1
      %p182 = scmp.eq.s32.totalorder %s27, 1
      %p183 = scmp.ne.s32.totalorder %s178, %s180
      %p184 = scmp.eq.s32.totalorder %s27, 0
      %p185 = por %p183, %p184
      %p186 = scmp.ne.s32.totalorder %s178, %s180
      %p187 = scmp.eq.s32.totalorder %s32, 1
      %p188 = por %p186, %p187
      %p189 = scmp.ne.s32.totalorder %s180, %s181
      %p190 = scmp.eq.s32.totalorder %s32, 0
      %p191 = por %p189, %p190
      %p192 = scmp.ne.s32.totalorder %s180, %s181
      %p193 = scmp.eq.s32.totalorder %s33, 1
      %p194 = por %p192, %p193
      %p196 = scmp.ne.s32.totalorder %s181, %s195
      %p197 = scmp.eq.s32.totalorder %s33, 0
      %p198 = por %p196, %p197
      %s200 = sadd.s32 %s199, 1
      %p203 = scmp.eq.s32.totalorder %s27, 1
      %p204 = scmp.ne.s32.totalorder %s199, %s201
      %p205 = scmp.eq.s32.totalorder %s27, 0
      %p206 = por %p204, %p205
      %p207 = scmp.ne.s32.totalorder %s199, %s201
      %p208 = scmp.eq.s32.totalorder %s32, 1
      %p209 = por %p207, %p208
      %p210 = scmp.ne.s32.totalorder %s201, %s202
      %p211 = scmp.eq.s32.totalorder %s32, 0
      %p212 = por %p210, %p211
      %p213 = scmp.ne.s32.totalorder %s201, %s202
      %p214 = scmp.eq.s32.totalorder %s33, 1
      %p215 = por %p213, %p214
      %p217 = scmp.ne.s32.totalorder %s202, %s216
      %p218 = scmp.eq.s32.totalorder %s33, 0
      %p219 = por %p217, %p218
      %s221 = sadd.s32 %s220, 1
      %p224 = scmp.eq.s32.totalorder %s27, 1
      %p225 = scmp.ne.s32.totalorder %s220, %s222
      %p226 = scmp.eq.s32.totalorder %s27, 0
      %p227 = por %p225, %p226
      %p228 = scmp.ne.s32.totalorder %s220, %s222
      %p229 = scmp.eq.s32.totalorder %s32, 1
      %p230 = por %p228, %p229
      %p231 = scmp.ne.s32.totalorder %s222, %s223
      %p232 = scmp.eq.s32.totalorder %s32, 0
      %p233 = por %p231, %p232
      %p234 = scmp.ne.s32.totalorder %s222, %s223
      %p235 = scmp.eq.s32.totalorder %s33, 1
      %p236 = por %p234, %p235
      %p238 = scmp.ne.s32.totalorder %s223, %s237
      %p239 = scmp.eq.s32.totalorder %s33, 0
      %p240 = por %p238, %p239
      %s242 = sadd.s32 %s241, 1
      %p245 = scmp.eq.s32.totalorder %s27, 1
      %p246 = scmp.ne.s32.totalorder %s241, %s243
      %p247 = scmp.eq.s32.totalorder %s27, 0
      %p248 = por %p246, %p247
      %p249 = scmp.ne.s32.totalorder %s241, %s243
      %p250 = scmp.eq.s32.totalorder %s32, 1
      %p251 = por %p249, %p250
      %p252 = scmp.ne.s32.totalorder %s243, %s244
      %p253 = scmp.eq.s32.totalorder %s32, 0
      %p254 = por %p252, %p253
      %p255 = scmp.ne.s32.totalorder %s243, %s244
      %p256 = scmp.eq.s32.totalorder %s33, 1
      %p257 = por %p255, %p256
      %p259 = scmp.ne.s32.totalorder %s244, %s258
      %p260 = scmp.eq.s32.totalorder %s33, 0
      %p261 = por %p259, %p260
      %s263 = sadd.s32 %s262, 1
      %p266 = scmp.eq.s32.totalorder %s27, 1
      %p267 = scmp.ne.s32.totalorder %s262, %s264
      %p268 = scmp.eq.s32.totalorder %s27, 0
      %p269 = por %p267, %p268
      %p270 = scmp.ne.s32.totalorder %s262, %s264
      %p271 = scmp.eq.s32.totalorder %s32, 1
      %p272 = por %p270, %p271
      %p273 = scmp.ne.s32.totalorder %s264, %s265
      %p274 = scmp.eq.s32.totalorder %s32, 0
      %p275 = por %p273, %p274
      %p276 = scmp.ne.s32.totalorder %s264, %s265
      %p277 = scmp.eq.s32.totalorder %s33, 1
      %p278 = por %p276, %p277
      %p280 = scmp.ne.s32.totalorder %s265, %s279
      %p281 = scmp.eq.s32.totalorder %s33, 0
      %p282 = por %p280, %p281
      %s283 = ssub.s32 %s34, %s46
      %s284 = ssub.s32 %s35, %s42
      %s285 = sor.u32 %s283, %s284
      %p286 = scmp.eq.s32.totalorder %s285, 0
      %s288 = sadd.s32 %s287, 1
      %s289 = scalar_select %p286, %s287, %s288
      %p292 = pneg %p286
      %p293 = scmp.eq.s32.totalorder %s27, 1
      %p294 = por %p292, %p293
      %p295 = scmp.ne.s32.totalorder %s287, %s290
      %p296 = scmp.eq.s32.totalorder %s27, 0
      %p297 = por %p295, %p296
      %p298 = scmp.ne.s32.totalorder %s287, %s290
      %p299 = scmp.eq.s32.totalorder %s32, 1
      %p300 = por %p298, %p299
      %p301 = scmp.ne.s32.totalorder %s290, %s291
      %p302 = scmp.eq.s32.totalorder %s32, 0
      %p303 = por %p301, %p302
      %p304 = scmp.ne.s32.totalorder %s290, %s291
      %p305 = scmp.eq.s32.totalorder %s33, 1
      %p306 = por %p304, %p305
      %p308 = scmp.ne.s32.totalorder %s291, %s307
      %p309 = scmp.eq.s32.totalorder %s33, 0
      %p310 = por %p308, %p309
      %s311 = ssub.s32 %s34, %s46
      %s312 = ssub.s32 %s35, %s42
      %s313 = sor.u32 %s311, %s312
      %p314 = scmp.eq.s32.totalorder %s313, 0
      %s316 = sadd.s32 %s315, 1
      %s317 = scalar_select %p314, %s315, %s316
      %p320 = pneg %p314
      %p321 = scmp.eq.s32.totalorder %s27, 1
      %p322 = por %p320, %p321
      %p323 = scmp.ne.s32.totalorder %s315, %s318
      %p324 = scmp.eq.s32.totalorder %s27, 0
      %p325 = por %p323, %p324
      %p326 = scmp.ne.s32.totalorder %s315, %s318
      %p327 = scmp.eq.s32.totalorder %s32, 1
      %p328 = por %p326, %p327
      %p329 = scmp.ne.s32.totalorder %s318, %s319
      %p330 = scmp.eq.s32.totalorder %s32, 0
      %p331 = por %p329, %p330
      %p332 = scmp.ne.s32.totalorder %s318, %s319
      %p333 = scmp.eq.s32.totalorder %s33, 1
      %p334 = por %p332, %p333
      %p336 = scmp.ne.s32.totalorder %s319, %s335
      %p337 = scmp.eq.s32.totalorder %s33, 0
      %p338 = por %p336, %p337
      %s339 = ssub.s32 %s34, %s46
      %s340 = ssub.s32 %s35, %s42
      %s341 = sor.u32 %s339, %s340
      %p342 = scmp.eq.s32.totalorder %s341, 0
      %s344 = sadd.s32 %s343, 1
      %s345 = scalar_select %p342, %s343, %s344
      %p348 = pneg %p342
      %p349 = scmp.eq.s32.totalorder %s27, 1
      %p350 = por %p348, %p349
      %p351 = scmp.ne.s32.totalorder %s343, %s346
      %p352 = scmp.eq.s32.totalorder %s27, 0
      %p353 = por %p351, %p352
      %p354 = scmp.ne.s32.totalorder %s343, %s346
      %p355 = scmp.eq.s32.totalorder %s32, 1
      %p356 = por %p354, %p355
      %p357 = scmp.ne.s32.totalorder %s346, %s347
      %p358 = scmp.eq.s32.totalorder %s32, 0
      %p359 = por %p357, %p358
      %p360 = scmp.ne.s32.totalorder %s346, %s347
      %p361 = scmp.eq.s32.totalorder %s33, 1
      %p362 = por %p360, %p361
      %p364 = scmp.ne.s32.totalorder %s347, %s363
      %p365 = scmp.eq.s32.totalorder %s33, 0
      %p366 = por %p364, %p365
      %s367 = ssub.s32 %s34, %s46
      %s368 = ssub.s32 %s35, %s42
      %s369 = sor.u32 %s367, %s368
      %p370 = scmp.eq.s32.totalorder %s369, 0
      %s372 = sadd.s32 %s371, 1
      %s373 = scalar_select %p370, %s371, %s372
      %p376 = pneg %p370
      %p377 = scmp.eq.s32.totalorder %s27, 1
      %p378 = por %p376, %p377
      %p379 = scmp.ne.s32.totalorder %s371, %s374
      %p380 = scmp.eq.s32.totalorder %s27, 0
      %p381 = por %p379, %p380
      %p382 = scmp.ne.s32.totalorder %s371, %s374
      %p383 = scmp.eq.s32.totalorder %s32, 1
      %p384 = por %p382, %p383
      %p385 = scmp.ne.s32.totalorder %s374, %s375
      %p386 = scmp.eq.s32.totalorder %s32, 0
      %p387 = por %p385, %p386
      %p388 = scmp.ne.s32.totalorder %s374, %s375
      %p389 = scmp.eq.s32.totalorder %s33, 1
      %p390 = por %p388, %p389
      %p392 = scmp.ne.s32.totalorder %s375, %s391
      %p393 = scmp.eq.s32.totalorder %s33, 0
      %p394 = por %p392, %p393
      %p395 = scmp.le.s32.totalorder 1, %s27
      %p396 = scmp.lt.s32.totalorder %s27, 3
      %p397 = pnand %p395, %p396
      %p398 = pneg %p397
      // Predicated region
      $region9: #{tpu_custom_call.1} parent=5 // pred_check
        _
      $region10: #{tpu_custom_call.1} parent=5 // pred_check_branch
        %400 = sbr.rel (%p397) target = $region12
      $region11: #{tpu_custom_call.1} parent=5 // pred_region
        %s401 = ssub.s32 %s27, 1
        // Predicated region
        $region13: #{tpu_custom_call.1} parent=11 // pred_check
          %p402 = pneg %p86
        $region14: #{tpu_custom_call.1} parent=11 // pred_check_branch
          %404 = sbr.rel (%p402) target = $region16
        $region15: #{tpu_custom_call.1} parent=11 // pred_region
          _
        $region16: #{tpu_custom_call.1} parent=11 // pred_fallthru
          _
        // Predicated region
        $region17: #{tpu_custom_call.1} parent=11 // pred_check
          %p405 = pneg %p107
        $region18: #{tpu_custom_call.1} parent=11 // pred_check_branch
          %407 = sbr.rel (%p405) target = $region20
        $region19: #{tpu_custom_call.1} parent=11 // pred_region
          _
        $region20: #{tpu_custom_call.1} parent=11 // pred_fallthru
          _
        // Predicated region
        $region21: #{tpu_custom_call.1} parent=11 // pred_check
          %p408 = pneg %p128
        $region22: #{tpu_custom_call.1} parent=11 // pred_check_branch
          %410 = sbr.rel (%p408) target = $region24
        $region23: #{tpu_custom_call.1} parent=11 // pred_region
          _
        $region24: #{tpu_custom_call.1} parent=11 // pred_fallthru
          _
        // Predicated region
        $region25: #{tpu_custom_call.1} parent=11 // pred_check
          %p411 = pneg %p149
        $region26: #{tpu_custom_call.1} parent=11 // pred_check_branch
          %413 = sbr.rel (%p411) target = $region28
        $region27: #{tpu_custom_call.1} parent=11 // pred_region
          _
        $region28: #{tpu_custom_call.1} parent=11 // pred_fallthru
          _
        // Predicated region
        $region29: #{tpu_custom_call.1} parent=11 // pred_check
          %p414 = pneg %p170
        $region30: #{tpu_custom_call.1} parent=11 // pred_check_branch
          %416 = sbr.rel (%p414) target = $region32
        $region31: #{tpu_custom_call.1} parent=11 // pred_region
          _
        $region32: #{tpu_custom_call.1} parent=11 // pred_fallthru
          _
        // Predicated region
        $region33: #{tpu_custom_call.1} parent=11 // pred_check
          %p417 = pneg %p191
        $region34: #{tpu_custom_call.1} parent=11 // pred_check_branch
          %419 = sbr.rel (%p417) target = $region36
        $region35: #{tpu_custom_call.1} parent=11 // pred_region
          _
        $region36: #{tpu_custom_call.1} parent=11 // pred_fallthru
          _
        // Predicated region
        $region37: #{tpu_custom_call.1} parent=11 // pred_check
          %p420 = pneg %p212
        $region38: #{tpu_custom_call.1} parent=11 // pred_check_branch
          %422 = sbr.rel (%p420) target = $region40
        $region39: #{tpu_custom_call.1} parent=11 // pred_region
          _
        $region40: #{tpu_custom_call.1} parent=11 // pred_fallthru
          _
        // Predicated region
        $region41: #{tpu_custom_call.1} parent=11 // pred_check
          %p423 = pneg %p233
        $region42: #{tpu_custom_call.1} parent=11 // pred_check_branch
          %425 = sbr.rel (%p423) target = $region44
        $region43: #{tpu_custom_call.1} parent=11 // pred_region
          _
        $region44: #{tpu_custom_call.1} parent=11 // pred_fallthru
          _
        // Predicated region
        $region45: #{tpu_custom_call.1} parent=11 // pred_check
          %p426 = pneg %p254
        $region46: #{tpu_custom_call.1} parent=11 // pred_check_branch
          %428 = sbr.rel (%p426) target = $region48
        $region47: #{tpu_custom_call.1} parent=11 // pred_region
          _
        $region48: #{tpu_custom_call.1} parent=11 // pred_fallthru
          _
        // Predicated region
        $region49: #{tpu_custom_call.1} parent=11 // pred_check
          %p429 = pneg %p275
        $region50: #{tpu_custom_call.1} parent=11 // pred_check_branch
          %431 = sbr.rel (%p429) target = $region52
        $region51: #{tpu_custom_call.1} parent=11 // pred_region
          _
        $region52: #{tpu_custom_call.1} parent=11 // pred_fallthru
          _
      $region12: #{tpu_custom_call.1} parent=5 // pred_fallthru
        _
      %p432 = scmp.lt.s32.totalorder %s27, 2
      // Predicated region
      $region53: #{tpu_custom_call.1} parent=5 // pred_check
        %p433 = pneg %p432
      $region54: #{tpu_custom_call.1} parent=5 // pred_check_branch
        %435 = sbr.rel (%p433) target = $region56
      $region55: #{tpu_custom_call.1} parent=5 // pred_region
        // Predicated region
        $region57: #{tpu_custom_call.1} parent=55 // pred_check
          %p436 = pneg %p59
        $region58: #{tpu_custom_call.1} parent=55 // pred_check_branch
          %438 = sbr.rel (%p436) target = $region60
        $region59: #{tpu_custom_call.1} parent=55 // pred_region
          %p439 = scmp.lt.s32.totalorder %s35, 1
          %s440 = scalar_select %p439, %s35, 1
          %s441 = smul.addr %s440, 2
          %s442 = scalar_lea.vmem %s0, %s441
        $region60: #{tpu_custom_call.1} parent=55 // pred_fallthru
          _
        // Predicated region
        $region61: #{tpu_custom_call.1} parent=55 // pred_check
          %p443 = pneg %p297
        $region62: #{tpu_custom_call.1} parent=55 // pred_check_branch
          %445 = sbr.rel (%p443) target = $region64
        $region63: #{tpu_custom_call.1} parent=55 // pred_region
          %p446 = scmp.lt.s32.totalorder %s34, 0
          %s447 = scalar_select %p446, %s34, 0
          %p448 = scmp.lt.s32.totalorder %s35, 1
          %s449 = scalar_select %p448, %s35, 1
          %s450 = smul.addr %s447, 2
          %s451 = sadd.s32 %s449, %s450
          %s452 = smul.addr %s451, 8
          %s453 = scalar_lea.vmem %s11, %s452
        $region64: #{tpu_custom_call.1} parent=55 // pred_fallthru
          _
        // Predicated region
        $region65: #{tpu_custom_call.1} parent=55 // pred_check
          %p454 = pneg %p325
        $region66: #{tpu_custom_call.1} parent=55 // pred_check_branch
          %456 = sbr.rel (%p454) target = $region68
        $region67: #{tpu_custom_call.1} parent=55 // pred_region
          %p457 = scmp.lt.s32.totalorder %s34, 0
          %s458 = scalar_select %p457, %s34, 0
          %p459 = scmp.lt.s32.totalorder %s35, 1
          %s460 = scalar_select %p459, %s35, 1
          %s461 = smul.addr %s458, 2
          %s462 = sadd.s32 %s460, %s461
          %s463 = smul.addr %s462, 8
          %s464 = scalar_lea.vmem %s12, %s463
        $region68: #{tpu_custom_call.1} parent=55 // pred_fallthru
          _
      $region56: #{tpu_custom_call.1} parent=5 // pred_fallthru
        _
      %p465 = scmp.le.s32.totalorder 1, %s27
      %p466 = scmp.lt.s32.totalorder %s27, 3
      %p467 = pnand %p465, %p466
      %p468 = pneg %p467
      // Predicated region
      $region69: #{tpu_custom_call.1} parent=5 // pred_check
        _
      $region70: #{tpu_custom_call.1} parent=5 // pred_check_branch
        %470 = sbr.rel (%p467) target = $region72
      $region71: #{tpu_custom_call.1} parent=5 // pred_region
        %s471 = ssub.s32 %s27, 1
        %p472 = scmp.lt.s32.totalorder %s37, 1
        %s473 = scalar_select %p472, %s37, 1
        %s474 = smul.addr %s473, 2
        %s475 = scalar_lea.vmem %s0, %s474
        %p476 = pneg %p65
        %p477 = pneg %p62
        %p478 = pneg %p86
        %p479 = pneg %p83
        %p480 = pneg %p107
        %p481 = pneg %p104
        %p482 = pneg %p128
        %p483 = pneg %p125
        %p484 = pneg %p149
        %p485 = pneg %p146
        %p486 = pneg %p170
        %p487 = pneg %p167
        %p488 = pneg %p191
        %p489 = pneg %p188
        %p490 = pneg %p212
        %p491 = pneg %p209
        %p492 = pneg %p233
        %p493 = pneg %p230
        %p494 = pneg %p254
        %p495 = pneg %p251
        %p496 = pneg %p275
        %p497 = pneg %p272
        %p498 = scmp.lt.s32.totalorder %s36, 0
        %s499 = scalar_select %p498, %s36, 0
        %p500 = scmp.lt.s32.totalorder %s37, 1
        %s501 = scalar_select %p500, %s37, 1
        %s502 = smul.addr %s499, 2
        %s503 = sadd.s32 %s501, %s502
        %s504 = smul.addr %s503, 8
        %s505 = scalar_lea.vmem %s11, %s504
        %p506 = pneg %p303
        %p507 = pneg %p300
        %p508 = scmp.lt.s32.totalorder %s36, 0
        %s509 = scalar_select %p508, %s36, 0
        %p510 = scmp.lt.s32.totalorder %s37, 1
        %s511 = scalar_select %p510, %s37, 1
        %s512 = smul.addr %s509, 2
        %s513 = sadd.s32 %s511, %s512
        %s514 = smul.addr %s513, 8
        %s515 = scalar_lea.vmem %s12, %s514
        %p516 = pneg %p331
        %p517 = pneg %p328
        %p518 = pneg %p359
        %p519 = pneg %p356
        %s520 = sand.u32 %s346, 1
        %s521 = scalar_lea.sflag [#allocation3], %s520
        %s522 = sand.u32 %s346, 1
        %s523 = smul.addr %s522, 8
        %s524 = scalar_lea.vmem [#allocation2], %s523
        %p525 = pneg %p387
        %p526 = pneg %p384
        %s527 = sand.u32 %s374, 1
        %s528 = scalar_lea.sflag [#allocation5], %s527
        %s529 = sand.u32 %s374, 1
        %s530 = smul.addr %s529, 8
        %s531 = scalar_lea.vmem [#allocation4], %s530
        %p532 = scmp.lt.s32.totalorder %s37, 1
        %s533 = scalar_select %p532, %s37, 1
        %s534 = smul.addr %s533, 2
        %s535 = scalar_lea.vmem %s0, %s534
        %p536 = scmp.lt.s32.totalorder %s36, 0
        %s537 = scalar_select %p536, %s36, 0
        %p538 = scmp.lt.s32.totalorder %s37, 1
        %s539 = scalar_select %p538, %s37, 1
        %s540 = smul.addr %s537, 2
        %s541 = sadd.s32 %s539, %s540
        %s542 = smul.addr %s541, 8
        %s543 = scalar_lea.vmem %s11, %s542
        %p544 = scmp.lt.s32.totalorder %s36, 0
        %s545 = scalar_select %p544, %s36, 0
        %p546 = scmp.lt.s32.totalorder %s37, 1
        %s547 = scalar_select %p546, %s37, 1
        %s548 = smul.addr %s545, 2
        %s549 = sadd.s32 %s547, %s548
        %s550 = smul.addr %s549, 8
        %s551 = scalar_lea.vmem %s12, %s550
        %v552 = vld [vmem:[%s535] sm:$0x3]
        %v553 = vld [vmem:[%s1] sm:$0xff]
        %v554 = vld [vmem:[%s1 + $0x8] sm:$0xff]
        %v555 = vld [vmem:[%s2] sm:$0xff]
        %v556 = vld [vmem:[%s2 + $0x8] sm:$0xff]
        %558 = vset.pattern.permute.xlu0 0
        %559 = vperm.xlu0 %558, %v553
        %v560 = vpop.permute.xlu0 %559
        %563 = vset.pattern.permute.xlu0 0
        %564 = vperm.xlu0 %563, %v554
        %v565 = vpop.permute.xlu0 %564
        %v567 = vlaneseq
        %v568 = vshrl.u32 %v567, 7
        %v569 = vsub.s32 0, %v568
        %v570 = vrot.slane %v552, %v569
        %v571 = vmul.f32 %v560, %v570
        %v572 = vmul.f32 %v565, %v570
        %574 = vset.pattern.permute.xlu0 0
        %575 = vperm.xlu0 %574, %v555
        %v576 = vpop.permute.xlu0 %575
        %579 = vset.pattern.permute.xlu0 0
        %580 = vperm.xlu0 %579, %v556
        %v581 = vpop.permute.xlu0 %580
        %v583 = vadd.f32 %v576, %v571
        %v584 = vadd.f32 %v581, %v572
        %585 = vset.pattern.permute.xlu0 1
        %586 = vperm.xlu0 %585, %v553
        %v587 = vpop.permute.xlu0 %586
        %589 = vset.pattern.permute.xlu0 1
        %590 = vperm.xlu0 %589, %v554
        %v591 = vpop.permute.xlu0 %590
        %v593 = vlaneseq
        %v594 = vshrl.u32 %v593, 7
        %v595 = vsub.s32 1, %v594
        %v596 = vrot.slane %v552, %v595
        %v597 = vmul.f32 %v587, %v596
        %v598 = vmul.f32 %v591, %v596
        %v599 = vadd.f32 %v583, %v597
        %v600 = vadd.f32 %v584, %v598
        %v601 = vsub.f32 0.0, %v599
        %v602 = vsub.f32 0.0, %v600
        %v603 = vmul.f32 %v601, 1.442695
        %v604 = vpow.pop %v603
        %v605 = vmul.f32 %v602, 1.442695
        %v606 = vpow.pop %v605
        %v607 = vadd.f32 %v604, 1.0
        %v608 = vadd.f32 %v606, 1.0
        %v609 = vrcp.pop %v607
        %v610 = vmul.f32 1.0, %v609
        %v611 = vrcp.pop %v608
        %v612 = vmul.f32 1.0, %v611
        %v613 = vmul.f32 %v599, %v610
        %v614 = vmul.f32 %v600, %v612
        %v615 = vld [vmem:[%s3] sm:$0xf]
        %v616 = vld [vmem:[%s4] sm:$0xf]
        %618 = vset.pattern.permute.xlu0 0
        %619 = vperm.xlu0 %618, %v615
        %v620 = vpop.permute.xlu0 %619
        %v622 = vlaneseq
        %v623 = vshrl.u32 %v622, 7
        %v624 = vsub.s32 0, %v623
        %v625 = vrot.slane %v613, %v624
        %v626 = vmul.f32 %v620, %v625
        %628 = vset.pattern.permute.xlu0 0
        %629 = vperm.xlu0 %628, %v616
        %v630 = vpop.permute.xlu0 %629
        %v632 = vadd.f32 %v630, %v626
        %633 = vset.pattern.permute.xlu0 1
        %634 = vperm.xlu0 %633, %v615
        %v635 = vpop.permute.xlu0 %634
        %v637 = vlaneseq
        %v638 = vshrl.u32 %v637, 7
        %v639 = vsub.s32 1, %v638
        %v640 = vrot.slane %v613, %v639
        %v641 = vmul.f32 %v635, %v640
        %v642 = vadd.f32 %v632, %v641
        %643 = vset.pattern.permute.xlu0 2
        %644 = vperm.xlu0 %643, %v615
        %v645 = vpop.permute.xlu0 %644
        %v647 = vlaneseq
        %v648 = vshrl.u32 %v647, 7
        %v649 = vsub.s32 2, %v648
        %v650 = vrot.slane %v613, %v649
        %v651 = vmul.f32 %v645, %v650
        %v652 = vadd.f32 %v642, %v651
        %653 = vset.pattern.permute.xlu0 3
        %654 = vperm.xlu0 %653, %v615
        %v655 = vpop.permute.xlu0 %654
        %v657 = vlaneseq
        %v658 = vshrl.u32 %v657, 7
        %v659 = vsub.s32 3, %v658
        %v660 = vrot.slane %v613, %v659
        %v661 = vmul.f32 %v655, %v660
        %v662 = vadd.f32 %v652, %v661
        %663 = vset.pattern.permute.xlu0 4
        %664 = vperm.xlu0 %663, %v615
        %v665 = vpop.permute.xlu0 %664
        %v667 = vlaneseq
        %v668 = vshrl.u32 %v667, 7
        %v669 = vsub.s32 4, %v668
        %v670 = vrot.slane %v613, %v669
        %v671 = vmul.f32 %v665, %v670
        %v672 = vadd.f32 %v662, %v671
        %673 = vset.pattern.permute.xlu0 5
        %674 = vperm.xlu0 %673, %v615
        %v675 = vpop.permute.xlu0 %674
        %v677 = vlaneseq
        %v678 = vshrl.u32 %v677, 7
        %v679 = vsub.s32 5, %v678
        %v680 = vrot.slane %v613, %v679
        %v681 = vmul.f32 %v675, %v680
        %v682 = vadd.f32 %v672, %v681
        %683 = vset.pattern.permute.xlu0 6
        %684 = vperm.xlu0 %683, %v615
        %v685 = vpop.permute.xlu0 %684
        %v687 = vlaneseq
        %v688 = vshrl.u32 %v687, 7
        %v689 = vsub.s32 6, %v688
        %v690 = vrot.slane %v613, %v689
        %v691 = vmul.f32 %v685, %v690
        %v692 = vadd.f32 %v682, %v691
        %693 = vset.pattern.permute.xlu0 7
        %694 = vperm.xlu0 %693, %v615
        %v695 = vpop.permute.xlu0 %694
        %v697 = vlaneseq
        %v698 = vshrl.u32 %v697, 7
        %v699 = vsub.s32 7, %v698
        %v700 = vrot.slane %v613, %v699
        %v701 = vmul.f32 %v695, %v700
        %v702 = vadd.f32 %v692, %v701
        %v703 = vsub.f32 0.0, %v702
        %v704 = vmul.f32 %v703, 1.442695
        %v705 = vpow.pop %v704
        %v706 = vadd.f32 %v705, 1.0
        %v707 = vrcp.pop %v706
        %v708 = vmul.f32 1.0, %v707
        %v709 = vmul.f32 %v702, %v708
        %v710 = vld [vmem:[%s7] sm:$0xf]
        %v711 = vld [vmem:[%s8] sm:$0xf]
        %713 = vset.pattern.permute.xlu0 0
        %714 = vperm.xlu0 %713, %v710
        %v715 = vpop.permute.xlu0 %714
        %v717 = vlaneseq
        %v718 = vshrl.u32 %v717, 7
        %v719 = vsub.s32 0, %v718
        %v720 = vrot.slane %v614, %v719
        %v721 = vmul.f32 %v715, %v720
        %723 = vset.pattern.permute.xlu0 0
        %724 = vperm.xlu0 %723, %v711
        %v725 = vpop.permute.xlu0 %724
        %v727 = vadd.f32 %v725, %v721
        %728 = vset.pattern.permute.xlu0 1
        %729 = vperm.xlu0 %728, %v710
        %v730 = vpop.permute.xlu0 %729
        %v732 = vlaneseq
        %v733 = vshrl.u32 %v732, 7
        %v734 = vsub.s32 1, %v733
        %v735 = vrot.slane %v614, %v734
        %v736 = vmul.f32 %v730, %v735
        %v737 = vadd.f32 %v727, %v736
        %738 = vset.pattern.permute.xlu0 2
        %739 = vperm.xlu0 %738, %v710
        %v740 = vpop.permute.xlu0 %739
        %v742 = vlaneseq
        %v743 = vshrl.u32 %v742, 7
        %v744 = vsub.s32 2, %v743
        %v745 = vrot.slane %v614, %v744
        %v746 = vmul.f32 %v740, %v745
        %v747 = vadd.f32 %v737, %v746
        %748 = vset.pattern.permute.xlu0 3
        %749 = vperm.xlu0 %748, %v710
        %v750 = vpop.permute.xlu0 %749
        %v752 = vlaneseq
        %v753 = vshrl.u32 %v752, 7
        %v754 = vsub.s32 3, %v753
        %v755 = vrot.slane %v614, %v754
        %v756 = vmul.f32 %v750, %v755
        %v757 = vadd.f32 %v747, %v756
        %758 = vset.pattern.permute.xlu0 4
        %759 = vperm.xlu0 %758, %v710
        %v760 = vpop.permute.xlu0 %759
        %v762 = vlaneseq
        %v763 = vshrl.u32 %v762, 7
        %v764 = vsub.s32 4, %v763
        %v765 = vrot.slane %v614, %v764
        %v766 = vmul.f32 %v760, %v765
        %v767 = vadd.f32 %v757, %v766
        %768 = vset.pattern.permute.xlu0 5
        %769 = vperm.xlu0 %768, %v710
        %v770 = vpop.permute.xlu0 %769
        %v772 = vlaneseq
        %v773 = vshrl.u32 %v772, 7
        %v774 = vsub.s32 5, %v773
        %v775 = vrot.slane %v614, %v774
        %v776 = vmul.f32 %v770, %v775
        %v777 = vadd.f32 %v767, %v776
        %778 = vset.pattern.permute.xlu0 6
        %779 = vperm.xlu0 %778, %v710
        %v780 = vpop.permute.xlu0 %779
        %v782 = vlaneseq
        %v783 = vshrl.u32 %v782, 7
        %v784 = vsub.s32 6, %v783
        %v785 = vrot.slane %v614, %v784
        %v786 = vmul.f32 %v780, %v785
        %v787 = vadd.f32 %v777, %v786
        %788 = vset.pattern.permute.xlu0 7
        %789 = vperm.xlu0 %788, %v710
        %v790 = vpop.permute.xlu0 %789
        %v792 = vlaneseq
        %v793 = vshrl.u32 %v792, 7
        %v794 = vsub.s32 7, %v793
        %v795 = vrot.slane %v614, %v794
        %v796 = vmul.f32 %v790, %v795
        %v797 = vadd.f32 %v787, %v796
        %v798 = vsub.f32 0.0, %v797
        %v799 = vmul.f32 %v798, 1.442695
        %v800 = vpow.pop %v799
        %v801 = vadd.f32 %v800, 1.0
        %v802 = vrcp.pop %v801
        %v803 = vmul.f32 1.0, %v802
        %v804 = vmul.f32 %v797, %v803
        %v805 = vld [vmem:[%s5] sm:$0xff]
        %v806 = vld [vmem:[%s6] sm:$0xff]
        %808 = vset.pattern.permute.xlu0 0
        %809 = vperm.xlu0 %808, %v805
        %v810 = vpop.permute.xlu0 %809
        %v812 = vlaneseq
        %v813 = vshrl.u32 %v812, 7
        %v814 = vsub.s32 0, %v813
        %v815 = vrot.slane %v709, %v814
        %v816 = vmul.f32 %v810, %v815
        %818 = vset.pattern.permute.xlu0 0
        %819 = vperm.xlu0 %818, %v806
        %v820 = vpop.permute.xlu0 %819
        %v822 = vadd.f32 %v820, %v816
        %823 = vset.pattern.permute.xlu0 1
        %824 = vperm.xlu0 %823, %v805
        %v825 = vpop.permute.xlu0 %824
        %v827 = vlaneseq
        %v828 = vshrl.u32 %v827, 7
        %v829 = vsub.s32 1, %v828
        %v830 = vrot.slane %v709, %v829
        %v831 = vmul.f32 %v825, %v830
        %v832 = vadd.f32 %v822, %v831
        %833 = vset.pattern.permute.xlu0 2
        %834 = vperm.xlu0 %833, %v805
        %v835 = vpop.permute.xlu0 %834
        %v837 = vlaneseq
        %v838 = vshrl.u32 %v837, 7
        %v839 = vsub.s32 2, %v838
        %v840 = vrot.slane %v709, %v839
        %v841 = vmul.f32 %v835, %v840
        %v842 = vadd.f32 %v832, %v841
        %843 = vset.pattern.permute.xlu0 3
        %844 = vperm.xlu0 %843, %v805
        %v845 = vpop.permute.xlu0 %844
        %v847 = vlaneseq
        %v848 = vshrl.u32 %v847, 7
        %v849 = vsub.s32 3, %v848
        %v850 = vrot.slane %v709, %v849
        %v851 = vmul.f32 %v845, %v850
        %v852 = vadd.f32 %v842, %v851
        %v853 = vld [vmem:[%s9] sm:$0xff]
        %v854 = vld [vmem:[%s10] sm:$0xff]
        %856 = vset.pattern.permute.xlu0 0
        %857 = vperm.xlu0 %856, %v853
        %v858 = vpop.permute.xlu0 %857
        %v860 = vlaneseq
        %v861 = vshrl.u32 %v860, 7
        %v862 = vsub.s32 0, %v861
        %v863 = vrot.slane %v804, %v862
        %v864 = vmul.f32 %v858, %v863
        %866 = vset.pattern.permute.xlu0 0
        %867 = vperm.xlu0 %866, %v854
        %v868 = vpop.permute.xlu0 %867
        %v870 = vadd.f32 %v868, %v864
        %871 = vset.pattern.permute.xlu0 1
        %872 = vperm.xlu0 %871, %v853
        %v873 = vpop.permute.xlu0 %872
        %v875 = vlaneseq
        %v876 = vshrl.u32 %v875, 7
        %v877 = vsub.s32 1, %v876
        %v878 = vrot.slane %v804, %v877
        %v879 = vmul.f32 %v873, %v878
        %v880 = vadd.f32 %v870, %v879
        %881 = vset.pattern.permute.xlu0 2
        %882 = vperm.xlu0 %881, %v853
        %v883 = vpop.permute.xlu0 %882
        %v885 = vlaneseq
        %v886 = vshrl.u32 %v885, 7
        %v887 = vsub.s32 2, %v886
        %v888 = vrot.slane %v804, %v887
        %v889 = vmul.f32 %v883, %v888
        %v890 = vadd.f32 %v880, %v889
        %891 = vset.pattern.permute.xlu0 3
        %892 = vperm.xlu0 %891, %v853
        %v893 = vpop.permute.xlu0 %892
        %v895 = vlaneseq
        %v896 = vshrl.u32 %v895, 7
        %v897 = vsub.s32 3, %v896
        %v898 = vrot.slane %v804, %v897
        %v899 = vmul.f32 %v893, %v898
        %v900 = vadd.f32 %v890, %v899
        %v901 = vld [vmem:[%s543] sm:$0xff]
        %v902 = vld [vmem:[%s551] sm:$0xff]
        %v903 = vmul.f32 %v852, %v901
        %v904 = vmul.f32 %v900, %v902
        %v905 = vsub.f32 %v903, %v904
        %906 = vst [vmem:[%s524] sm:$0xff] %v905
        %v907 = vmul.f32 %v852, %v902
        %v908 = vmul.f32 %v900, %v901
        %v909 = vadd.f32 %v907, %v908
        %910 = vst [vmem:[%s531] sm:$0xff] %v909
        %s911 = sand.u32 %s346, 1
        %s912 = scalar_lea.sflag [#allocation3], %s911
        %s913 = sand.u32 %s346, 1
        %s914 = smul.addr %s913, 8
        %s915 = scalar_lea.vmem [#allocation2], %s914
        %s916 = sand.u32 %s374, 1
        %s917 = scalar_lea.sflag [#allocation5], %s916
        %s918 = sand.u32 %s374, 1
        %s919 = smul.addr %s918, 8
        %s920 = scalar_lea.vmem [#allocation4], %s919
        // Predicated region
        $region73: #{tpu_custom_call.1} parent=71 // pred_check
          %p921 = pneg %p356
        $region74: #{tpu_custom_call.1} parent=71 // pred_check_branch
          %923 = sbr.rel (%p921) target = $region76
        $region75: #{tpu_custom_call.1} parent=71 // pred_region
          %s925 = ssub.s32 128, 128
          %926 = vsyncadd %s912, %s925
          %s927 = smul.addr %s36, 2
          %s928 = sadd.s32 %s37, %s927
          %s929 = smul.addr %s928, 128
          %s930 = scalar_lea.hbm %s13, %s929
          %s932 = sshll.u32 %s915, 4
          %s933 = int_to_ptr.vmem [resolvable:$true] %s932
          %935 = dma.vmem_to_hbm [thread:$0]  %s933, 128, %s930, %s912
        $region76: #{tpu_custom_call.1} parent=71 // pred_fallthru
          _
        // Predicated region
        $region77: #{tpu_custom_call.1} parent=71 // pred_check
          %p936 = pneg %p384
        $region78: #{tpu_custom_call.1} parent=71 // pred_check_branch
          %938 = sbr.rel (%p936) target = $region80
        $region79: #{tpu_custom_call.1} parent=71 // pred_region
          %s940 = ssub.s32 128, 128
          %941 = vsyncadd %s917, %s940
          %s942 = smul.addr %s36, 2
          %s943 = sadd.s32 %s37, %s942
          %s944 = smul.addr %s943, 128
          %s945 = scalar_lea.hbm %s14, %s944
          %s947 = sshll.u32 %s920, 4
          %s948 = int_to_ptr.vmem [resolvable:$true] %s947
          %950 = dma.vmem_to_hbm [thread:$0]  %s948, 128, %s945, %s917
        $region80: #{tpu_custom_call.1} parent=71 // pred_fallthru
          _
      $region72: #{tpu_custom_call.1} parent=5 // pred_fallthru
        _
      %p951 = scmp.le.s32.totalorder 2, %s27
      // Predicated region
      $region81: #{tpu_custom_call.1} parent=5 // pred_check
        %p952 = pneg %p951
      $region82: #{tpu_custom_call.1} parent=5 // pred_check_branch
        %954 = sbr.rel (%p952) target = $region84
      $region83: #{tpu_custom_call.1} parent=5 // pred_region
        %s955 = ssub.s32 %s27, 2
        // Predicated region
        $region85: #{tpu_custom_call.1} parent=83 // pred_check
          %p956 = pneg %p362
        $region86: #{tpu_custom_call.1} parent=83 // pred_check_branch
          %958 = sbr.rel (%p956) target = $region88
        $region87: #{tpu_custom_call.1} parent=83 // pred_region
          %s959 = sand.u32 %s347, 1
          %s960 = scalar_lea.sflag [#allocation3], %s959
          %s961 = sand.u32 %s347, 1
          %s962 = smul.addr %s961, 8
          %s963 = scalar_lea.vmem [#allocation2], %s962
          %964 = dma.done %s960, 128
        $region88: #{tpu_custom_call.1} parent=83 // pred_fallthru
          _
        // Predicated region
        $region89: #{tpu_custom_call.1} parent=83 // pred_check
          %p965 = pneg %p390
        $region90: #{tpu_custom_call.1} parent=83 // pred_check_branch
          %967 = sbr.rel (%p965) target = $region92
        $region91: #{tpu_custom_call.1} parent=83 // pred_region
          %s968 = sand.u32 %s375, 1
          %s969 = scalar_lea.sflag [#allocation5], %s968
          %s970 = sand.u32 %s375, 1
          %s971 = smul.addr %s970, 8
          %s972 = scalar_lea.vmem [#allocation4], %s971
          %973 = dma.done %s969, 128
        $region92: #{tpu_custom_call.1} parent=83 // pred_fallthru
          _
      $region84: #{tpu_custom_call.1} parent=5 // pred_fallthru
        _
    $region6: #{tpu_custom_call.1} parent=1 // loop_footer
      %s31 = sadd.s32 1, %s27
    $region7: #{tpu_custom_call.1} parent=1 // loop_footer_branch
      %26 = sbr.rel target = $region3
    $region8: #{tpu_custom_call.1} parent=1 // loop_exit
      _
    %974 = vsyncpa [#allocation3], 1
    %s975 = scalar_lea.sflag [#allocation3], 1
    %976 = vsyncpa %s975, 1
    %977 = vsyncpa [#allocation5], 1
    %s978 = scalar_lea.sflag [#allocation5], 1
    %979 = vsyncpa %s978, 1

</llo_original>
